<compile_context>
chip_gen: v6e
topology: v6e:2x2x1
jax: 0.10.0
libtpu: 0.0.40
codegen_flags: <defaults>
</compile_context>

<pallas_src>
import functools
import math

import jax
import jax.numpy as jnp
from jax import lax
from jax.experimental import pallas as pl
from jax.experimental.pallas import tpu as pltpu


# ---------------------- tiled linear kernel: y = x @ W^T + b ----------------------

def _linear_kernel(x_ref, w_ref, b_ref, o_ref, acc_ref):
    """One (tm, tn) output tile; K is the innermost ('arbitrary') grid axis."""
    @pl.when(pl.program_id(2) == 0)
    def _init():
        acc_ref[...] = jnp.zeros_like(acc_ref)

    # W stays in its PyTorch (out, in) layout: contract x's axis 1 with W's
    # axis 1 — the MXU handles the transposed-RHS orientation natively.
    acc_ref[...] += lax.dot_general(
        x_ref[...], w_ref[...],
        dimension_numbers=(((1,), (1,)), ((), ())),
        preferred_element_type=jnp.float32)

    @pl.when(pl.program_id(2) == pl.num_programs(2) - 1)
    def _finalize():
        o_ref[...] = (acc_ref[...] + b_ref[...]).astype(o_ref.dtype)


def _pick_tile(dim, want):
    # `want` is a multiple of (8, 128); otherwise fall back to the full dim,
    # which is always a legal TPU block extent.
    return want if (dim >= want and dim % want == 0) else dim


def pallas_linear(x, w, b, *, tm=256, tn=256, tk=512):
    """y = x @ w.T + b   (w in the PyTorch (out, in) layout).

    Tiles are sized so (2 inputs x 2 buffers + accumulator) stays ~3 MiB —
    comfortably inside the scoped-VMEM defaults on v5e/v6e and v7x's 64 MiB.
    """
    n, k_dim = x.shape
    o_dim = w.shape[0]
    tm = _pick_tile(n, tm)
    tn = _pick_tile(o_dim, tn)
    tk = _pick_tile(k_dim, tk)
    b2 = b.reshape(1, o_dim)
    grid = (n // tm, o_dim // tn, k_dim // tk)
    return pl.pallas_call(
        _linear_kernel,
        grid=grid,
        in_specs=[
            pl.BlockSpec((tm, tk), lambda i, j, k: (i, k)),
            pl.BlockSpec((tn, tk), lambda i, j, k: (j, k)),
            pl.BlockSpec((1, tn), lambda i, j, k: (0, j)),
        ],
        out_specs=pl.BlockSpec((tm, tn), lambda i, j, k: (i, j)),
        out_shape=jax.ShapeDtypeStruct((n, o_dim), jnp.float32),
        scratch_shapes=[pltpu.VMEM((tm, tn), jnp.float32)],
        compiler_params=pltpu.CompilerParams(
            dimension_semantics=("parallel", "parallel", "arbitrary")),
    )(x, w, b2)


# ------------------------------ attention kernel ------------------------------

def _attn_kernel(q_ref, k_ref, v_ref, o_ref, w_ref, *,
                 num_heads, head_dim, scale):
    """One (batch, q-tile) grid step processing ALL heads.

    q_ref: (tq, H, Dh)   k_ref/v_ref: (S, H, Dh)
    o_ref: (tq, E)       w_ref: (tq, S)  -- head-averaged softmax weights.
    """
    inv_h = 1.0 / num_heads
    # Load each operand from VMEM once; slice per head as arrays.
    # Scaling (head_dim**-0.5 / sqrt(src_len)) folded into q here.
    q_all = (q_ref[...] * scale).astype(jnp.bfloat16)   # (tq, H, Dh)
    k_all = k_ref[...].astype(jnp.bfloat16)              # (S, H, Dh)
    v_all = v_ref[...].astype(jnp.bfloat16)              # (S, H, Dh)

    outs = []
    w_acc = None
    for h in range(num_heads):                            # static unroll over heads
        qh = q_all[:, h, :]                               # (tq, Dh)
        kh = k_all[:, h, :]                               # (S, Dh)
        vh = v_all[:, h, :]                               # (S, Dh)

        # scores = scale * q @ k^T  — bf16 MXU matmul, f32 accumulation.
        s = lax.dot_general(qh, kh, (((1,), (1,)), ((), ())),
                            preferred_element_type=jnp.float32)        # (tq, S)
        m = jnp.max(s, axis=-1, keepdims=True)
        e = jnp.exp(s - m)
        p = e * pl.reciprocal(jnp.sum(e, axis=-1, keepdims=True), approx=True)
        # TODO(synk): F.dropout(attn_weights, p=attn_dropout, training=True)
        # has no torch-RNG-matching Pallas equivalent; eval mode (identity).

        outs.append(jnp.dot(p.astype(jnp.bfloat16), vh,
                            preferred_element_type=jnp.float32))        # (tq, Dh)
        w_acc = p * inv_h if w_acc is None else w_acc + p * inv_h

    # Single lane-dense (tq, E) store instead of per-head partial stores.
    o_ref[...] = jnp.concatenate(outs, axis=-1).astype(o_ref.dtype)
    w_ref[...] = w_acc.astype(w_ref.dtype)


def _pallas_attention(q5, k5, v5, q_idx, k_idx, v_idx, *, num_heads, head_dim):
    """q5: (T, B, nq, H, Dh); k5/v5: (S, B, nk, H, Dh).

    In the self-attention path q5/k5/v5 are the SAME fused projection array
    (T, B, 3, H, Dh) read at qkv-axis indices 0/1/2 directly from HBM — no
    wrapper transposes or slices.  Returns (attn (B, T, E), weights (B, T, S)).
    """
    tgt_len, bsz = q5.shape[0], q5.shape[1]
    src_len = k5.shape[0]
    embed_dim = num_heads * head_dim

    # Tile the query/time axis so long sequences keep a bounded VMEM footprint.
    if tgt_len % 256 == 0:
        tq = 256
    elif tgt_len % 128 == 0:
        tq = 128
    else:
        tq = tgt_len
    # TODO(synk): for very long src_len also tile S flash-attention style
    # (online-softmax scratch) so the per-step (tq, S) block fits v7x's 64 MiB.

    # The module scales q by head_dim**-0.5 AND divides scores by sqrt(src_len)
    # (faithful to DBPNet's MultiheadAttention, unlike torch.nn.MultiheadAttention).
    scale = (head_dim ** -0.5) / math.sqrt(src_len)

    kernel = functools.partial(_attn_kernel, num_heads=num_heads,
                               head_dim=head_dim, scale=scale)
    grid = (bsz, tgt_len // tq)

    return pl.pallas_call(
        kernel,
        grid=grid,
        in_specs=[
            # block dims: (q-tile, batch[squeezed], qkv[squeezed], heads, Dh)
            pl.BlockSpec((tq, None, None, num_heads, head_dim),
                         lambda b, t: (t, b, q_idx, 0, 0)),
            # k/v block indices are constant in t, so Pallas skips re-DMA
            # across consecutive q-tiles of the same batch.
            pl.BlockSpec((src_len, None, None, num_heads, head_dim),
                         lambda b, t: (0, b, k_idx, 0, 0)),
            pl.BlockSpec((src_len, None, None, num_heads, head_dim),
                         lambda b, t: (0, b, v_idx, 0, 0)),
        ],
        out_specs=[
            pl.BlockSpec((None, tq, embed_dim), lambda b, t: (b, t, 0)),
            pl.BlockSpec((None, tq, src_len), lambda b, t: (b, t, 0)),
        ],
        out_shape=[
            jax.ShapeDtypeStruct((bsz, tgt_len, embed_dim), jnp.float32),
            jax.ShapeDtypeStruct((bsz, tgt_len, src_len), jnp.float32),
        ],
        compiler_params=pltpu.CompilerParams(
            dimension_semantics=("parallel", "parallel")),
    )(q5, k5, v5)


# ------------------------------ full forward ------------------------------

def multihead_attention(query, key, value, params, num_heads):
    """Reproduces MultiheadAttention.forward (bias=True, no bias_kv, no
    zero_attn, attn_mask=None, eval-mode dropout).

    query/key/value: (Time, Batch, Embed) float32.
    Returns (output (T, B, E), head-averaged weights (B, T, S)).
    """
    tgt_len, bsz, embed_dim = query.shape
    src_len = key.shape[0]
    assert embed_dim % num_heads == 0, "embed_dim must be divisible by num_heads"
    head_dim = embed_dim // num_heads

    w_in = params["in_proj_weight"]      # (3E, E)  torch layout
    b_in = params["in_proj_bias"]        # (3E,)
    w_out = params["out_proj_weight"]    # (E, E)
    b_out = params["out_proj_bias"]      # (E,)

    if (query is key) and (key is value):
        # Self-attention: ONE fused projection against the full (3E, E) weight.
        qkv = pallas_linear(query.reshape(tgt_len * bsz, embed_dim), w_in, b_in)
        qkv = qkv.reshape(tgt_len, bsz, 3, num_heads, head_dim)   # free view
        q5 = k5 = v5 = qkv
        qi, ki, vi = 0, 1, 2
    elif key is value:
        # Encoder-decoder style: fuse the K and V projections (2E rows).
        q = pallas_linear(query.reshape(tgt_len * bsz, embed_dim),
                          w_in[:embed_dim], b_in[:embed_dim])
        kv = pallas_linear(key.reshape(src_len * bsz, embed_dim),
                           w_in[embed_dim:], b_in[embed_dim:])
        q5 = q.reshape(tgt_len, bsz, 1, num_heads, head_dim)
        k5 = v5 = kv.reshape(src_len, bsz, 2, num_heads, head_dim)
        qi, ki, vi = 0, 0, 1
    else:
        q = pallas_linear(query.reshape(tgt_len * bsz, embed_dim),
                          w_in[:embed_dim], b_in[:embed_dim])
        k = pallas_linear(key.reshape(src_len * bsz, embed_dim),
                          w_in[embed_dim:2 * embed_dim],
                          b_in[embed_dim:2 * embed_dim])
        v = pallas_linear(value.reshape(src_len * bsz, embed_dim),
                          w_in[2 * embed_dim:], b_in[2 * embed_dim:])
        q5 = q.reshape(tgt_len, bsz, 1, num_heads, head_dim)
        k5 = k.reshape(src_len, bsz, 1, num_heads, head_dim)
        v5 = v.reshape(src_len, bsz, 1, num_heads, head_dim)
        qi, ki, vi = 0, 0, 0

    # q scaling is folded into the attention kernel constant (no wrapper mul).
    attn_bte, weights = _pallas_attention(q5, k5, v5, qi, ki, vi,
                                          num_heads=num_heads,
                                          head_dim=head_dim)

    # out-projection on (B*T, E) rows, then one transpose back to (T, B, E).
    out = pallas_linear(attn_bte.reshape(bsz * tgt_len, embed_dim), w_out, b_out)
    out = out.reshape(bsz, tgt_len, embed_dim).transpose(1, 0, 2)
    return out, weights


# ------------------------------ param init --------------------------------

def init_params(key, embed_dim):
    def xavier_uniform(k, shape):
        fan_out, fan_in = shape
        bound = math.sqrt(6.0 / (fan_in + fan_out))
        return jax.random.uniform(k, shape, jnp.float32, -bound, bound)

    k1, k2 = jax.random.split(key)
    return {
        "in_proj_weight": xavier_uniform(k1, (3 * embed_dim, embed_dim)),
        "in_proj_bias": jnp.zeros((3 * embed_dim,), jnp.float32),
        "out_proj_weight": xavier_uniform(k2, (embed_dim, embed_dim)),
        "out_proj_bias": jnp.zeros((embed_dim,), jnp.float32),
    }


if __name__ == "__main__":
    TGT_LEN, BATCH, EMBED, HEADS = 8, 2, 32, 4

    root = jax.random.PRNGKey(0)
    k_params, k_x = jax.random.split(root)
    params = init_params(k_params, EMBED)

    # self-attention example: query == key == value, (Time, Batch, Embed)
    x = jax.random.normal(k_x, (TGT_LEN, BATCH, EMBED), dtype=jnp.float32)

    attn_out, attn_weights = multihead_attention(x, x, x, params, HEADS)
    jax.block_until_ready((attn_out, attn_weights))

    assert attn_out.shape == (TGT_LEN, BATCH, EMBED)
    assert attn_weights.shape == (BATCH, TGT_LEN, TGT_LEN)
    assert bool(jnp.isfinite(attn_out).all())
    assert bool(jnp.isfinite(attn_weights).all())
    # softmax rows of the head-averaged weights should sum to ~1
    assert bool(jnp.allclose(attn_weights.sum(-1), 1.0, atol=1e-2))
    print("KERNEL_OK")
</pallas_src>

<mosaic_0001>
module attributes {stable_mosaic.version = 11 : i64} {
  func.func @_linear_kernel(%arg0: i32, %arg1: i32, %arg2: i32, %arg3: memref<16x32xf32, #tpu.memory_space<vmem>>, %arg4: memref<96x32xf32, #tpu.memory_space<vmem>>, %arg5: memref<1x96xf32, #tpu.memory_space<vmem>>, %arg6: memref<16x96xf32, #tpu.memory_space<vmem>>, %arg7: memref<16x96xf32, #tpu.memory_space<vmem>>) attributes {dimension_semantics = [#tpu.dimension_semantics<parallel>, #tpu.dimension_semantics<parallel>, #tpu.dimension_semantics<arbitrary>], iteration_bounds = array<i64: 1, 1, 1>, scalar_prefetch = 0 : i64, scratch_operands = 1 : i64, tpu.core_type = #tpu.core_type<tc>, window_params = [{transform_indices = @transform_0, window_bounds = array<i64: 16, 32>}, {transform_indices = @transform_1, window_bounds = array<i64: 96, 32>}, {transform_indices = @transform_2, window_bounds = array<i64: 1, 96>}, {transform_indices = @transform_3, window_bounds = array<i64: 16, 96>}]} {
    %c0_i32 = arith.constant 0 : i32
    %0 = arith.cmpi eq, %arg2, %c0_i32 : i32
    %1 = arith.extui %0 : i1 to i32
    %c0_i32_0 = arith.constant 0 : i32
    %2 = arith.cmpi ne, %1, %c0_i32_0 : i32
    scf.if %2 {
      %cst_10 = arith.constant 0.000000e+00 : f32
      %12 = vector.broadcast %cst_10 : f32 to vector<16x96xf32>
      %c0_11 = arith.constant 0 : index
      %c0_12 = arith.constant 0 : index
      %13 = vector.load %arg7[%c0_11, %c0_12] : memref<16x96xf32, #tpu.memory_space<vmem>>, vector<16x96xf32>
      tpu.vector_store %arg7[%c0_11, %c0_12], %12 {strides = array<i32>} : memref<16x96xf32, #tpu.memory_space<vmem>>, vector<16x96xf32>,
    } else {
    }
    %c0 = arith.constant 0 : index
    %c0_1 = arith.constant 0 : index
    %3 = vector.load %arg7[%c0, %c0_1] : memref<16x96xf32, #tpu.memory_space<vmem>>, vector<16x96xf32>
    %c0_2 = arith.constant 0 : index
    %c0_3 = arith.constant 0 : index
    %4 = vector.load %arg3[%c0_2, %c0_3] : memref<16x32xf32, #tpu.memory_space<vmem>>, vector<16x32xf32>
    %c0_4 = arith.constant 0 : index
    %c0_5 = arith.constant 0 : index
    %5 = vector.load %arg4[%c0_4, %c0_5] : memref<96x32xf32, #tpu.memory_space<vmem>>, vector<96x32xf32>
    %cst = arith.constant dense<0.000000e+00> : vector<16x96xf32>
    %6 = tpu.matmul %4, %5, %cst {dimension_numbers = #tpu.dot_dimension_numbers<[1], [1], [0], [0], [0, 0, 1, 0], [], []>} : vector<16x32xf32>, vector<96x32xf32>, vector<16x96xf32> -> vector<16x96xf32>
    %7 = arith.addf %3, %6 : vector<16x96xf32>
    %c0_6 = arith.constant 0 : index
    %c0_7 = arith.constant 0 : index
    %8 = vector.load %arg7[%c0_6, %c0_7] : memref<16x96xf32, #tpu.memory_space<vmem>>, vector<16x96xf32>
    tpu.vector_store %arg7[%c0_6, %c0_7], %7 {strides = array<i32>} : memref<16x96xf32, #tpu.memory_space<vmem>>, vector<16x96xf32>,
    %c0_i32_8 = arith.constant 0 : i32
    %9 = arith.cmpi eq, %arg2, %c0_i32_8 : i32
    %10 = arith.extui %9 : i1 to i32
    %c0_i32_9 = arith.constant 0 : i32
    %11 = arith.cmpi ne, %10, %c0_i32_9 : i32
    scf.if %11 {
      %c0_10 = arith.constant 0 : index
      %c0_11 = arith.constant 0 : index
      %12 = vector.load %arg7[%c0_10, %c0_11] : memref<16x96xf32, #tpu.memory_space<vmem>>, vector<16x96xf32>
      %c0_12 = arith.constant 0 : index
      %c0_13 = arith.constant 0 : index
      %13 = vector.load %arg5[%c0_12, %c0_13] : memref<1x96xf32, #tpu.memory_space<vmem>>, vector<1x96xf32>
      %14 = vector.broadcast %13 : vector<1x96xf32> to vector<16x96xf32>
      %15 = arith.addf %12, %14 : vector<16x96xf32>
      %c0_14 = arith.constant 0 : index
      %c0_15 = arith.constant 0 : index
      %16 = vector.load %arg6[%c0_14, %c0_15] : memref<16x96xf32, #tpu.memory_space<vmem>>, vector<16x96xf32>
      tpu.vector_store %arg6[%c0_14, %c0_15], %15 {strides = array<i32>} : memref<16x96xf32, #tpu.memory_space<vmem>>, vector<16x96xf32>,
    } else {
    }
    return
  }
  func.func @transform_0(%arg0: i32, %arg1: i32, %arg2: i32) -> (i32, i32) {
    %c0_i32 = arith.constant 0 : i32
    return %arg0, %arg2 : i32, i32
  }
  func.func @transform_1(%arg0: i32, %arg1: i32, %arg2: i32) -> (i32, i32) {
    %c0_i32 = arith.constant 0 : i32
    return %arg1, %arg2 : i32, i32
  }
  func.func @transform_2(%arg0: i32, %arg1: i32, %arg2: i32) -> (i32, i32) {
    %c0_i32 = arith.constant 0 : i32
    %c0_i32_0 = arith.constant 0 : i32
    return %c0_i32, %arg1 : i32, i32
  }
  func.func @transform_3(%arg0: i32, %arg1: i32, %arg2: i32) -> (i32, i32) {
    %c0_i32 = arith.constant 0 : i32
    return %arg0, %arg1 : i32, i32
  }
}

</mosaic_0001>

<llo_original>
// kernel: tpu_custom_call.1
$region0: #{tpu_custom_call.1}
  #allocation0 [shape = 'u32[]', space=smem, size = 0x4, offset = 0x4, fixed_abs, tag = 'smem constant byte address 0x4 - core index']
  #allocation1 [shape = 'u32[144,128]{1,0:T(1,128)}', space=vmem, size = 0x12000, scoped, tag = 'internal scratch']
  #allocation2 [shape = 'f32[16,96]{1,0:T(8,128)}', space=vmem, size = 0x2000, scoped, tag = 'scratch operand']
  %s0 = inlined_call_operand.vmem [shape: f32[16,32], index: 0, kind: input, shape index: {}]
  %s1 = inlined_call_operand.vmem [shape: f32[96,32], index: 1, kind: input, shape index: {}]
  %s2 = inlined_call_operand.vmem [shape: f32[1,96], index: 2, kind: input, shape index: {}]
  %s3 = inlined_call_operand.hbm [shape: f32[16,96], index: 3, kind: output, shape index: {}]
  %s4 = sld [smem:[#allocation0]]
  $region30: #{tpu_custom_call.1} parent=0
    _
  %s6 = ssub.s32 1, %s4
  %s7 = scalar_select 0, %s6, %s4
  $region1: #{tpu_custom_call.1} parent=0
    #allocation3 [shape = 'u8[8192]{0}', space=vmem, size = 0x2000, scoped, tag = 'output window, operand 0, single buffered']
    #allocation4 [shape = 's32[1]{0}', space=sflag, size = 0x4, scoped, tag = 'scoped memory for tpu_custom_call.1']
    %8 = vsyncpa [#allocation4], 0
    // Predicated region
    $region2: #{tpu_custom_call.1} parent=1 // pred_check
      _
    $region3: #{tpu_custom_call.1} parent=1 // pred_check_branch
      %10 = sbr.rel (0) target = $region5
    $region4: #{tpu_custom_call.1} parent=1 // pred_region
      _
    $region5: #{tpu_custom_call.1} parent=1 // pred_fallthru
      _
    // Predicated region
    $region6: #{tpu_custom_call.1} parent=1 // pred_check
      _
    $region7: #{tpu_custom_call.1} parent=1 // pred_check_branch
      %12 = sbr.rel (0) target = $region9
    $region8: #{tpu_custom_call.1} parent=1 // pred_region
      _
    $region9: #{tpu_custom_call.1} parent=1 // pred_fallthru
      _
    // Predicated region
    $region10: #{tpu_custom_call.1} parent=1 // pred_check
      _
    $region11: #{tpu_custom_call.1} parent=1 // pred_check_branch
      %14 = sbr.rel (0) target = $region13
    $region12: #{tpu_custom_call.1} parent=1 // pred_region
      _
    $region13: #{tpu_custom_call.1} parent=1 // pred_fallthru
      _
    %p15 = scmp.eq.s32.totalorder 0, 0
    // Predicated region
    $region14: #{tpu_custom_call.1} parent=1 // pred_check
      %p16 = pneg %p15
    $region15: #{tpu_custom_call.1} parent=1 // pred_check_branch
      %18 = sbr.rel (%p16) target = $region17
    $region16: #{tpu_custom_call.1} parent=1 // pred_region
      %vm19 = vcmask 785408
      %20 = vst.msk [vmem:[#allocation2] sm:$0xff] %vm19, 0.0
      %21 = vst.msk [vmem:[#allocation2 + $0x8] sm:$0xff] %vm19, 0.0
    $region17: #{tpu_custom_call.1} parent=1 // pred_fallthru
      _
    %v22 = vld [vmem:[#allocation2] sm:$0xff]
    %v23 = vld [vmem:[#allocation2 + $0x8] sm:$0xff]
    %v24 = vld [vmem:[%s0] sm:$0xff]
    %v25 = vld [vmem:[%s0 + $0x8] sm:$0xff]
    %v26 = vld [vmem:[%s1] sm:$0xff]
    %v27 = vld [vmem:[%s1 + $0x8] sm:$0xff]
    %v28 = vld [vmem:[%s1 + $0x10] sm:$0xff]
    %v29 = vld [vmem:[%s1 + $0x18] sm:$0xff]
    %v30 = vld [vmem:[%s1 + $0x20] sm:$0xff]
    %v31 = vld [vmem:[%s1 + $0x28] sm:$0xff]
    %v32 = vld [vmem:[%s1 + $0x30] sm:$0xff]
    %v33 = vld [vmem:[%s1 + $0x38] sm:$0xff]
    %v34 = vld [vmem:[%s1 + $0x40] sm:$0xff]
    %v35 = vld [vmem:[%s1 + $0x48] sm:$0xff]
    %v36 = vld [vmem:[%s1 + $0x50] sm:$0xff]
    %v37 = vld [vmem:[%s1 + $0x58] sm:$0xff]
    %vm38 = vcmask 261120
    %v40 = vsel %vm38, %v24, 0
    %v43 = vsel %vm38, %v25, 0
    %v46 = vsel %vm38, %v26, 0
    %v49 = vsel %vm38, %v27, 0
    %v52 = vsel %vm38, %v28, 0
    %v55 = vsel %vm38, %v29, 0
    %v58 = vsel %vm38, %v30, 0
    %v61 = vsel %vm38, %v31, 0
    %v64 = vsel %vm38, %v32, 0
    %v67 = vsel %vm38, %v33, 0
    %v70 = vsel %vm38, %v34, 0
    %v73 = vsel %vm38, %v35, 0
    %v76 = vsel %vm38, %v36, 0
    %v79 = vsel %vm38, %v37, 0
    %81 = vmatprep.subr.mxu0 0.0
    %82 = vmatpush1.xpose.msra.mxu0 0.0
    %83 = vmatprep.subr.mxu0 0.0
    %84 = vmatpush1.xpose.msra.mxu0 0.0
    %85 = vmatprep.subr.mxu0 0.0
    %86 = vmatpush1.xpose.msra.mxu0 0.0
    %87 = vmatprep.subr.mxu0 0.0
    %88 = vmatpush1.xpose.msra.mxu0 0.0
    %89 = vmatprep.subr.mxu0 0.0
    %90 = vmatpush1.xpose.msra.mxu0 %v79
    %91 = vmatprep.subr.mxu0 0.0
    %92 = vmatpush1.xpose.msra.mxu0 %v76
    %93 = vmatprep.subr.mxu0 0.0
    %94 = vmatpush1.xpose.msra.mxu0 %v73
    %95 = vmatprep.subr.mxu0 0.0
    %96 = vmatpush1.xpose.msra.mxu0 %v70
    %97 = vmatprep.subr.mxu0 0.0
    %98 = vmatpush1.xpose.msra.mxu0 %v67
    %99 = vmatprep.subr.mxu0 0.0
    %100 = vmatpush1.xpose.msra.mxu0 %v64
    %101 = vmatprep.subr.mxu0 0.0
    %102 = vmatpush1.xpose.msra.mxu0 %v61
    %103 = vmatprep.subr.mxu0 0.0
    %104 = vmatpush1.xpose.msra.mxu0 %v58
    %105 = vmatprep.subr.mxu0 0.0
    %106 = vmatpush1.xpose.msra.mxu0 %v55
    %107 = vmatprep.subr.mxu0 0.0
    %108 = vmatpush1.xpose.msra.mxu0 %v52
    %109 = vmatprep.subr.mxu0 0.0
    %110 = vmatpush1.xpose.msra.mxu0 %v49
    %111 = vmatprep.subr.mxu0 0.0
    %112 = vmatpush1.xpose.msra.mxu0 %v46
    %113 = vmatprep.subr.mxu0 0.0
    %114 = vmatpush2.xpose.msra.mxu0 0.0
    %115 = vmatprep.subr.mxu0 0.0
    %116 = vmatpush2.xpose.msra.mxu0 0.0
    %117 = vmatprep.subr.mxu0 0.0
    %118 = vmatpush2.xpose.msra.mxu0 0.0
    %119 = vmatprep.subr.mxu0 0.0
    %120 = vmatpush2.xpose.msra.mxu0 0.0
    %121 = vmatprep.subr.mxu0 0.0
    %122 = vmatpush2.xpose.msra.mxu0 0.0
    %123 = vmatprep.subr.mxu0 0.0
    %124 = vmatpush2.xpose.msra.mxu0 0.0
    %125 = vmatprep.subr.mxu0 0.0
    %126 = vmatpush2.xpose.msra.mxu0 0.0
    %127 = vmatprep.subr.mxu0 0.0
    %128 = vmatpush2.xpose.msra.mxu0 0.0
    %129 = vmatprep.subr.mxu0 0.0
    %130 = vmatpush2.xpose.msra.mxu0 0.0
    %131 = vmatprep.subr.mxu0 0.0
    %132 = vmatpush2.xpose.msra.mxu0 0.0
    %133 = vmatprep.subr.mxu0 0.0
    %134 = vmatpush2.xpose.msra.mxu0 0.0
    %135 = vmatprep.subr.mxu0 0.0
    %136 = vmatpush2.xpose.msra.mxu0 0.0
    %137 = vmatprep.subr.mxu0 0.0
    %138 = vmatpush2.xpose.msra.mxu0 0.0
    %139 = vmatprep.subr.mxu0 0.0
    %140 = vmatpush2.xpose.msra.mxu0 0.0
    %141 = vmatprep.subr.mxu0 0.0
    %142 = vmatpush2.xpose.msra.mxu0 0.0
    %143 = vmatprep.subr.mxu0 0.0
    %144 = vmatpush2.xpose.msra.mxu0 0.0
    %145 = vmatprep.mubr.f32.mxu0 0.0
    %146 = vmatmul.mubr.f32.gmra.mxu0 %v40
    %v147 = vpop.f32.mrf.mxu0
    %v148 = vadd.f32 0.0, %v147
    %v149 = vpop.f32.mrf.mxu0
    %150 = vmatprep.mubr.f32.mxu0 0.0
    %151 = vmatmul.mubr.f32.gmra.mxu0 %v43
    %v152 = vpop.f32.mrf.mxu0
    %v153 = vadd.f32 0.0, %v152
    %v154 = vpop.f32.mrf.mxu0
    %155 = vdwg.mxu0
    %v156 = vadd.f32 %v22, %v148
    %v157 = vadd.f32 %v23, %v153
    %vm158 = vcmask 785408
    %159 = vst.msk [vmem:[#allocation2] sm:$0xff] %vm158, %v156
    %160 = vst.msk [vmem:[#allocation2 + $0x8] sm:$0xff] %vm158, %v157
    // Predicated region
    $region18: #{tpu_custom_call.1} parent=1 // pred_check
      %p161 = pneg %p15
    $region19: #{tpu_custom_call.1} parent=1 // pred_check_branch
      %163 = sbr.rel (%p161) target = $region21
    $region20: #{tpu_custom_call.1} parent=1 // pred_region
      %v164 = vld [vmem:[#allocation2] sm:$0xff]
      %v165 = vld [vmem:[#allocation2 + $0x8] sm:$0xff]
      %v166 = vld [vmem:[%s2] sm:$0x1]
      %v168 = vlaneseq
      %v169 = vshrl.u32 %v168, 7
      %v170 = vsub.s32 0, %v169
      %v171 = vrot.slane %v166, %v170
      %v173 = vadd.f32 %v164, %v171
      %v174 = vadd.f32 %v165, %v171
      %175 = vst.msk [vmem:[#allocation3] sm:$0xff] %vm158, %v173
      %176 = vst.msk [vmem:[#allocation3 + $0x8] sm:$0xff] %vm158, %v174
    $region21: #{tpu_custom_call.1} parent=1 // pred_fallthru
      _
    // Predicated region
    $region22: #{tpu_custom_call.1} parent=1 // pred_check
      _
    $region23: #{tpu_custom_call.1} parent=1 // pred_check_branch
      %178 = sbr.rel (0) target = $region25
    $region24: #{tpu_custom_call.1} parent=1 // pred_region
      %s180 = ssub.s32 256, 256
      %181 = vsyncadd [#allocation4], %s180
      %s182 = sshll.u32 [#allocation3], 4
      %s183 = int_to_ptr.vmem [resolvable:$true] %s182
      %188 = dma.vmem_to_hbm [thread:$0]  %s183, 256, %s3, [#allocation4], 128, 128, 8
    $region25: #{tpu_custom_call.1} parent=1 // pred_fallthru
      _
    // Predicated region
    $region26: #{tpu_custom_call.1} parent=1 // pred_check
      _
    $region27: #{tpu_custom_call.1} parent=1 // pred_check_branch
      %190 = sbr.rel (0) target = $region29
    $region28: #{tpu_custom_call.1} parent=1 // pred_region
      %191 = dma.done [#allocation4], 256
    $region29: #{tpu_custom_call.1} parent=1 // pred_fallthru
      _
    %192 = vsyncpa [#allocation4], 1

</llo_original>
